<compile_context>
chip_gen: v7x
topology: tpu7x:2x2x1
jax: 0.10.0
libtpu: 0.0.40
codegen_flags: <defaults>
</compile_context>

<pallas_src>
import jax
import jax.numpy as jnp
from jax.experimental import pallas as pl
from jax.experimental.pallas import tpu as pltpu

LANE = 128     # lane width (last dim tiling)
SUBLANE = 8    # sublane width (second-to-last dim tiling)
VMEM_LIMIT_BYTES = 32 * 1024 * 1024   # requested scoped VMEM (safe on v5e/v6e/v7x)
VMEM_BUDGET_BYTES = 20 * 1024 * 1024  # headroom-included budget used for tile sizing


# ----------------------------- fused Pallas kernel ------------------------------

def fused_gcn_kernel(a_ref, x_ref, w_ref, b_ref, p_ref, wl_ref, bl_ref,
                     o_ref, h_ref, xw_ref):
    """Grid = (layer l, node-row tile i).

    a_ref : [tm, Npad]        bf16   row tile of Â (streamed; resident if tm == Npad)
    x_ref : [Npad, Dpad]      bf16   padded input node features (loaded once)
    w_ref : [1, Dpad, Dpad]   bf16   W_l for the current layer
    b_ref : [1, 1, Dpad]      f32    b_l for the current layer
    p_ref : [Gpad, Npad]      bf16   mean-pooling matrix (loaded once)
    wl_ref: [Dpad, Cpad]      bf16   readout Linear weight
    bl_ref: [1, Cpad]         f32    readout Linear bias
    o_ref : [Gpad, Cpad]      f32    graph logits (written only at the last step)
    h_ref : [Npad, Dpad]      bf16   scratch: node features (updated in place per layer)
    xw_ref: [Npad, Dpad]      bf16   scratch: H_{l-1} @ W_l for the current layer
    """
    l = pl.program_id(0)
    i = pl.program_id(1)
    n_layers = pl.num_programs(0)
    n_tiles = pl.num_programs(1)
    tm = a_ref.shape[0]

    # Seed the feature buffer with the (padded) input features at the very first step.
    @pl.when(jnp.logical_and(l == 0, i == 0))
    def _():
        h_ref[...] = x_ref[...]

    # Once per layer: dense projection H_{l-1} @ W_l, kept in VMEM for all row tiles.
    @pl.when(i == 0)
    def _():
        xw_ref[...] = jnp.dot(
            h_ref[...], w_ref[0], preferred_element_type=jnp.float32
        ).astype(xw_ref.dtype)

    # Row tile of  Â @ (H_{l-1} W_l) + b_l ; ReLU on all but the last conv layer.
    acc = jnp.dot(a_ref[...], xw_ref[...], preferred_element_type=jnp.float32)
    acc = acc + b_ref[0]
    acc = jnp.where(l < n_layers - 1, jnp.maximum(acc, 0.0), acc)
    row0 = pl.multiple_of(i * tm, tm)
    # In-place update is safe: H_{l-1} was fully consumed by the xw_ref compute above.
    h_ref[pl.ds(row0, tm), :] = acc.astype(h_ref.dtype)

    # Epilogue at the very last grid step: global_mean_pool (P @ H) fused with the Linear.
    # dropout(p=0.5) is identity in eval mode.
    @pl.when(jnp.logical_and(l == n_layers - 1, i == n_tiles - 1))
    def _():
        pooled = jnp.dot(p_ref[...], h_ref[...], preferred_element_type=jnp.float32)
        o_ref[...] = jnp.dot(
            pooled.astype(wl_ref.dtype), wl_ref[...],
            preferred_element_type=jnp.float32) + bl_ref[...]


# ------------------------------ wrapper ------------------------------------------

def _round_up(x, m):
    return ((x + m - 1) // m) * m


def _pick_row_tile(npad, dpad, gpad, cpad, budget_bytes):
    """Largest divisor of npad (multiple of 8) whose VMEM footprint fits the budget."""
    candidates = sorted(
        {c for c in (npad, 2048, 1024, 512, 256, 128, 64, 32, 16, 8)
         if c <= npad and npad % c == 0 and c % SUBLANE == 0},
        reverse=True)
    fixed = (2 * npad * dpad * 2      # X (double-buffered by the pipeline)
             + 2 * dpad * dpad * 2    # W_l block
             + 2 * dpad * 4           # b_l block
             + 2 * gpad * npad * 2    # pooling matrix P
             + 2 * dpad * cpad * 2    # W_lin
             + 2 * cpad * 4           # b_lin
             + 2 * gpad * cpad * 4    # output block
             + 2 * npad * dpad * 2)   # scratches: H + XW
    for tm in candidates:
        if fixed + 2 * tm * npad * 2 <= budget_bytes:
            return tm
    return candidates[-1]


def gcn_forward_fused(params, x, a_hat, pool_mat):
    """Run the fused GCN forward pass. Returns [num_graphs, num_classes] f32 logits."""
    n, f = x.shape
    g = pool_mat.shape[0]
    h = params["w1"].shape[1]
    c = params["w_lin"].shape[1]

    dpad = _round_up(max(f, h), LANE)   # shared lane-padded feature width for X and H
    cpad = _round_up(c, LANE)
    npad = _round_up(n, LANE)
    gpad = _round_up(g, SUBLANE)
    tm = _pick_row_tile(npad, dpad, gpad, cpad, VMEM_BUDGET_BYTES)
    assert npad % tm == 0 and tm % SUBLANE == 0

    f32, bf16 = jnp.float32, jnp.bfloat16

    # Zero-padded, bf16 MXU inputs (f32 accumulate inside the kernel). Padding is inert.
    a_p = jnp.zeros((npad, npad), f32).at[:n, :n].set(a_hat).astype(bf16)
    x_p = jnp.zeros((npad, dpad), f32).at[:n, :f].set(x).astype(bf16)

    w_stack = jnp.zeros((3, dpad, dpad), f32)
    w_stack = w_stack.at[0, :f, :h].set(params["w1"])
    w_stack = w_stack.at[1, :h, :h].set(params["w2"])
    w_stack = w_stack.at[2, :h, :h].set(params["w3"])
    w_stack = w_stack.astype(bf16)

    b_stack = jnp.zeros((3, 1, dpad), f32)
    b_stack = b_stack.at[0, :, :h].set(params["b1"])
    b_stack = b_stack.at[1, :, :h].set(params["b2"])
    b_stack = b_stack.at[2, :, :h].set(params["b3"])

    p_p = jnp.zeros((gpad, npad), f32).at[:g, :n].set(pool_mat).astype(bf16)
    wl_p = jnp.zeros((dpad, cpad), f32).at[:h, :c].set(params["w_lin"]).astype(bf16)
    bl_p = jnp.zeros((1, cpad), f32).at[:, :c].set(params["b_lin"])

    grid = (3, npad // tm)   # (layer, node-row tile); row-tile axis innermost
    out = pl.pallas_call(
        fused_gcn_kernel,
        out_shape=jax.ShapeDtypeStruct((gpad, cpad), jnp.float32),
        grid_spec=pltpu.PrefetchScalarGridSpec(
            num_scalar_prefetch=0,
            grid=grid,
            in_specs=[
                pl.BlockSpec((tm, npad), lambda l, i: (i, 0)),          # Â row tile
                pl.BlockSpec((npad, dpad), lambda l, i: (0, 0)),        # X (loaded once)
                pl.BlockSpec((1, dpad, dpad), lambda l, i: (l, 0, 0)),  # W_l
                pl.BlockSpec((1, 1, dpad), lambda l, i: (l, 0, 0)),     # b_l
                pl.BlockSpec((gpad, npad), lambda l, i: (0, 0)),        # pooling matrix
                pl.BlockSpec((dpad, cpad), lambda l, i: (0, 0)),        # W_lin
                pl.BlockSpec((1, cpad), lambda l, i: (0, 0)),           # b_lin
            ],
            out_specs=pl.BlockSpec((gpad, cpad), lambda l, i: (0, 0)),
            scratch_shapes=[
                pltpu.VMEM((npad, dpad), jnp.bfloat16),   # H (node features)
                pltpu.VMEM((npad, dpad), jnp.bfloat16),   # H_{l-1} @ W_l
            ],
        ),
        compiler_params=pltpu.CompilerParams(
            dimension_semantics=("arbitrary", "arbitrary"),
            vmem_limit_bytes=VMEM_LIMIT_BYTES),
    )(a_p, x_p, w_stack, b_stack, p_p, wl_p, bl_p)
    return out[:g, :c]


# ------------------------------ JAX glue ------------------------------------

def normalized_adjacency(edge_index, num_nodes):
    """Dense GCN normalization: Â = D^-1/2 (A + I) D^-1/2.

    Note: self-loops are added unconditionally and duplicate edges accumulate
    (matches building from a clean, coalesced, loop-free edge_index).
    """
    src, dst = edge_index[0], edge_index[1]
    a = jnp.zeros((num_nodes, num_nodes), jnp.float32)
    a = a.at[dst, src].add(1.0)
    a = a + jnp.eye(num_nodes, dtype=jnp.float32)
    deg = a.sum(axis=1)
    d_inv_sqrt = 1.0 / jnp.sqrt(deg)
    return d_inv_sqrt[:, None] * a * d_inv_sqrt[None, :]


def pooling_matrix(batch, num_graphs, num_nodes):
    """P[g, i] = 1/count(g) if batch[i] == g else 0  (global_mean_pool)."""
    one_hot = (batch[None, :] == jnp.arange(num_graphs)[:, None]).astype(jnp.float32)
    counts = one_hot.sum(axis=1, keepdims=True)
    return one_hot / jnp.maximum(counts, 1.0)


def init_params(key, num_features, hidden, num_classes):
    ks = jax.random.split(key, 8)

    def glorot(k, fan_in, fan_out):
        limit = jnp.sqrt(6.0 / (fan_in + fan_out))
        return jax.random.uniform(k, (fan_in, fan_out), jnp.float32, -limit, limit)

    return {
        "w1": glorot(ks[0], num_features, hidden),
        "b1": jnp.zeros((1, hidden), jnp.float32),
        "w2": glorot(ks[1], hidden, hidden),
        "b2": jnp.zeros((1, hidden), jnp.float32),
        "w3": glorot(ks[2], hidden, hidden),
        "b3": jnp.zeros((1, hidden), jnp.float32),
        "w_lin": jax.random.uniform(ks[3], (hidden, num_classes), jnp.float32,
                                    -1.0 / jnp.sqrt(hidden), 1.0 / jnp.sqrt(hidden)),
        "b_lin": jax.random.uniform(ks[4], (1, num_classes), jnp.float32,
                                    -1.0 / jnp.sqrt(hidden), 1.0 / jnp.sqrt(hidden)),
    }


def gcn_reference(params, x, a_hat, pool_mat):
    """Pure-JAX f32 reference of the same forward pass (for a sanity check)."""
    h = jnp.maximum(a_hat @ (x @ params["w1"]) + params["b1"], 0.0)
    h = jnp.maximum(a_hat @ (h @ params["w2"]) + params["b2"], 0.0)
    h = a_hat @ (h @ params["w3"]) + params["b3"]
    pooled = pool_mat @ h
    return pooled @ params["w_lin"] + params["b_lin"]


# ------------------------------ main ----------------------------------------

if __name__ == "__main__":
    key = jax.random.PRNGKey(0)

    # Small synthetic graph batch: 2 graphs of 16 nodes each.
    NUM_NODES = 32
    NUM_GRAPHS = 2
    NUM_NODE_FEATURES = 8
    HIDDEN_CHANNELS = 32
    NUM_CLASSES = 4

    k_x, k_p = jax.random.split(key)
    x = jax.random.normal(k_x, (NUM_NODES, NUM_NODE_FEATURES), jnp.float32)

    # Ring edges within each graph (symmetric).
    nodes_per_graph = NUM_NODES // NUM_GRAPHS
    srcs, dsts = [], []
    for gi in range(NUM_GRAPHS):
        base = gi * nodes_per_graph
        for i in range(nodes_per_graph):
            a = base + i
            b = base + (i + 1) % nodes_per_graph
            srcs += [a, b]
            dsts += [b, a]
    edge_index = jnp.array([srcs, dsts], dtype=jnp.int32)
    batch = jnp.repeat(jnp.arange(NUM_GRAPHS, dtype=jnp.int32), nodes_per_graph)

    a_hat = normalized_adjacency(edge_index, NUM_NODES)
    pool_mat = pooling_matrix(batch, NUM_GRAPHS, NUM_NODES)
    params = init_params(k_p, NUM_NODE_FEATURES, HIDDEN_CHANNELS, NUM_CLASSES)

    out = jax.jit(gcn_forward_fused)(params, x, a_hat, pool_mat)
    out = jax.block_until_ready(out)
    assert out.shape == (NUM_GRAPHS, NUM_CLASSES)

    # Sanity check against the pure-f32 reference (bf16 MXU inputs -> loose tolerance).
    ref = gcn_reference(params, x, a_hat, pool_mat)
    max_err = float(jnp.max(jnp.abs(out - ref)))
    assert max_err < 5e-2, f"kernel/reference mismatch: max abs err = {max_err}"

    print("KERNEL_OK")
</pallas_src>

<mosaic_0001>
module attributes {stable_mosaic.version = 11 : i64} {
  func.func @fused_gcn_kernel(%arg0: i32, %arg1: i32, %arg2: memref<128x128xbf16, #tpu.memory_space<vmem>>, %arg3: memref<128x128xbf16, #tpu.memory_space<vmem>>, %arg4: memref<1x128x128xbf16, #tpu.memory_space<vmem>>, %arg5: memref<1x1x128xf32, #tpu.memory_space<vmem>>, %arg6: memref<8x128xbf16, #tpu.memory_space<vmem>>, %arg7: memref<128x128xbf16, #tpu.memory_space<vmem>>, %arg8: memref<1x128xf32, #tpu.memory_space<vmem>>, %arg9: memref<8x128xf32, #tpu.memory_space<vmem>>, %arg10: memref<128x128xbf16, #tpu.memory_space<vmem>>, %arg11: memref<128x128xbf16, #tpu.memory_space<vmem>>) attributes {dimension_semantics = [#tpu.dimension_semantics<arbitrary>, #tpu.dimension_semantics<arbitrary>], iteration_bounds = array<i64: 3, 1>, scalar_prefetch = 0 : i64, scratch_operands = 2 : i64, tpu.core_type = #tpu.core_type<tc>, window_params = [{transform_indices = @transform_0, window_bounds = array<i64: 128, 128>}, {pipeline_mode = #tpu.pipeline_mode<synchronous>, transform_indices = @transform_1, window_bounds = array<i64: 128, 128>}, {transform_indices = @transform_2, window_bounds = array<i64: 1, 128, 128>}, {transform_indices = @transform_3, window_bounds = array<i64: 1, 1, 128>}, {pipeline_mode = #tpu.pipeline_mode<synchronous>, transform_indices = @transform_4, window_bounds = array<i64: 8, 128>}, {pipeline_mode = #tpu.pipeline_mode<synchronous>, transform_indices = @transform_5, window_bounds = array<i64: 128, 128>}, {pipeline_mode = #tpu.pipeline_mode<synchronous>, transform_indices = @transform_6, window_bounds = array<i64: 1, 128>}, {pipeline_mode = #tpu.pipeline_mode<synchronous>, transform_indices = @transform_7, window_bounds = array<i64: 8, 128>}]} {
    %c0_i32 = arith.constant 0 : i32
    %0 = arith.cmpi eq, %arg0, %c0_i32 : i32
    %c0_i32_0 = arith.constant 0 : i32
    %1 = arith.cmpi eq, %arg1, %c0_i32_0 : i32
    %2 = arith.andi %0, %1 : i1
    %3 = arith.extui %2 : i1 to i32
    %c0_i32_1 = arith.constant 0 : i32
    %4 = arith.cmpi ne, %3, %c0_i32_1 : i32
    scf.if %4 {
      %c0_15 = arith.constant 0 : index
      %c0_16 = arith.constant 0 : index
      %29 = vector.load %arg3[%c0_15, %c0_16] : memref<128x128xbf16, #tpu.memory_space<vmem>>, vector<128x128xbf16>
      %c0_17 = arith.constant 0 : index
      %c0_18 = arith.constant 0 : index
      %30 = vector.load %arg10[%c0_17, %c0_18] : memref<128x128xbf16, #tpu.memory_space<vmem>>, vector<128x128xbf16>
      tpu.vector_store %arg10[%c0_17, %c0_18], %29 {strides = array<i32>} : memref<128x128xbf16, #tpu.memory_space<vmem>>, vector<128x128xbf16>,
    } else {
    }
    %c0_i32_2 = arith.constant 0 : i32
    %5 = arith.cmpi eq, %arg1, %c0_i32_2 : i32
    %6 = arith.extui %5 : i1 to i32
    %c0_i32_3 = arith.constant 0 : i32
    %7 = arith.cmpi ne, %6, %c0_i32_3 : i32
    scf.if %7 {
      %c0_15 = arith.constant 0 : index
      %c0_16 = arith.constant 0 : index
      %29 = vector.load %arg10[%c0_15, %c0_16] : memref<128x128xbf16, #tpu.memory_space<vmem>>, vector<128x128xbf16>
      %c0_17 = arith.constant 0 : index
      %c0_18 = arith.constant 0 : index
      %c0_19 = arith.constant 0 : index
      %30 = vector.load %arg4[%c0_17, %c0_18, %c0_19] : memref<1x128x128xbf16, #tpu.memory_space<vmem>>, vector<1x128x128xbf16>
      %31 = vector.shape_cast %30 : vector<1x128x128xbf16> to vector<128x128xbf16>
      %cst_20 = arith.constant dense<0.000000e+00> : vector<128x128xf32>
      %32 = tpu.matmul %29, %31, %cst_20 {dimension_numbers = #tpu.dot_dimension_numbers<[1], [0], [0], [1], [0, 0, 1, 1], [], []>} : vector<128x128xbf16>, vector<128x128xbf16>, vector<128x128xf32> -> vector<128x128xf32>
      %33 = arith.truncf %32 : vector<128x128xf32> to vector<128x128xbf16>
      %c0_21 = arith.constant 0 : index
      %c0_22 = arith.constant 0 : index
      %34 = vector.load %arg11[%c0_21, %c0_22] : memref<128x128xbf16, #tpu.memory_space<vmem>>, vector<128x128xbf16>
      tpu.vector_store %arg11[%c0_21, %c0_22], %33 {strides = array<i32>} : memref<128x128xbf16, #tpu.memory_space<vmem>>, vector<128x128xbf16>,
    } else {
    }
    %c0 = arith.constant 0 : index
    %c0_4 = arith.constant 0 : index
    %8 = vector.load %arg2[%c0, %c0_4] : memref<128x128xbf16, #tpu.memory_space<vmem>>, vector<128x128xbf16>
    %c0_5 = arith.constant 0 : index
    %c0_6 = arith.constant 0 : index
    %9 = vector.load %arg11[%c0_5, %c0_6] : memref<128x128xbf16, #tpu.memory_space<vmem>>, vector<128x128xbf16>
    %cst = arith.constant dense<0.000000e+00> : vector<128x128xf32>
    %10 = tpu.matmul %8, %9, %cst {dimension_numbers = #tpu.dot_dimension_numbers<[1], [0], [0], [1], [0, 0, 1, 1], [], []>} : vector<128x128xbf16>, vector<128x128xbf16>, vector<128x128xf32> -> vector<128x128xf32>
    %c0_7 = arith.constant 0 : index
    %c0_8 = arith.constant 0 : index
    %c0_9 = arith.constant 0 : index
    %11 = vector.load %arg5[%c0_7, %c0_8, %c0_9] : memref<1x1x128xf32, #tpu.memory_space<vmem>>, vector<1x1x128xf32>
    %12 = vector.shape_cast %11 : vector<1x1x128xf32> to vector<1x128xf32>
    %13 = vector.broadcast %12 : vector<1x128xf32> to vector<128x128xf32>
    %14 = arith.addf %10, %13 : vector<128x128xf32>
    %c2_i32 = arith.constant 2 : i32
    %15 = arith.cmpi slt, %arg0, %c2_i32 : i32
    %cst_10 = arith.constant 0.000000e+00 : f32
    %16 = vector.broadcast %cst_10 : f32 to vector<128x128xf32>
    %17 = arith.maximumf %14, %16 : vector<128x128xf32>
    %18 = arith.select %15, %17, %14 : vector<128x128xf32>
    %c128_i32 = arith.constant 128 : i32
    %19 = arith.muli %arg1, %c128_i32 : i32
    %20 = tpu.assume_multiple %19, 128 : i32
    %21 = arith.truncf %18 : vector<128x128xf32> to vector<128x128xbf16>
    %22 = arith.index_cast %20 : i32 to index
    %c0_11 = arith.constant 0 : index
    %23 = vector.load %arg10[%22, %c0_11] : memref<128x128xbf16, #tpu.memory_space<vmem>>, vector<128x128xbf16>
    tpu.vector_store %arg10[%22, %c0_11], %21 {strides = array<i32>} : memref<128x128xbf16, #tpu.memory_space<vmem>>, vector<128x128xbf16>,
    %c2_i32_12 = arith.constant 2 : i32
    %24 = arith.cmpi eq, %arg0, %c2_i32_12 : i32
    %c0_i32_13 = arith.constant 0 : i32
    %25 = arith.cmpi eq, %arg1, %c0_i32_13 : i32
    %26 = arith.andi %24, %25 : i1
    %27 = arith.extui %26 : i1 to i32
    %c0_i32_14 = arith.constant 0 : i32
    %28 = arith.cmpi ne, %27, %c0_i32_14 : i32
    scf.if %28 {
      %c0_15 = arith.constant 0 : index
      %c0_16 = arith.constant 0 : index
      %29 = vector.load %arg6[%c0_15, %c0_16] : memref<8x128xbf16, #tpu.memory_space<vmem>>, vector<8x128xbf16>
      %c0_17 = arith.constant 0 : index
      %c0_18 = arith.constant 0 : index
      %30 = vector.load %arg10[%c0_17, %c0_18] : memref<128x128xbf16, #tpu.memory_space<vmem>>, vector<128x128xbf16>
      %cst_19 = arith.constant dense<0.000000e+00> : vector<8x128xf32>
      %31 = tpu.matmul %29, %30, %cst_19 {dimension_numbers = #tpu.dot_dimension_numbers<[1], [0], [0], [1], [0, 0, 1, 1], [], []>} : vector<8x128xbf16>, vector<128x128xbf16>, vector<8x128xf32> -> vector<8x128xf32>
      %32 = arith.truncf %31 : vector<8x128xf32> to vector<8x128xbf16>
      %c0_20 = arith.constant 0 : index
      %c0_21 = arith.constant 0 : index
      %33 = vector.load %arg7[%c0_20, %c0_21] : memref<128x128xbf16, #tpu.memory_space<vmem>>, vector<128x128xbf16>
      %cst_22 = arith.constant dense<0.000000e+00> : vector<8x128xf32>
      %34 = tpu.matmul %32, %33, %cst_22 {dimension_numbers = #tpu.dot_dimension_numbers<[1], [0], [0], [1], [0, 0, 1, 1], [], []>} : vector<8x128xbf16>, vector<128x128xbf16>, vector<8x128xf32> -> vector<8x128xf32>
      %c0_23 = arith.constant 0 : index
      %c0_24 = arith.constant 0 : index
      %35 = vector.load %arg8[%c0_23, %c0_24] : memref<1x128xf32, #tpu.memory_space<vmem>>, vector<1x128xf32>
      %36 = vector.broadcast %35 : vector<1x128xf32> to vector<8x128xf32>
      %37 = arith.addf %34, %36 : vector<8x128xf32>
      %c0_25 = arith.constant 0 : index
      %c0_26 = arith.constant 0 : index
      %38 = vector.load %arg9[%c0_25, %c0_26] : memref<8x128xf32, #tpu.memory_space<vmem>>, vector<8x128xf32>
      tpu.vector_store %arg9[%c0_25, %c0_26], %37 {strides = array<i32>} : memref<8x128xf32, #tpu.memory_space<vmem>>, vector<8x128xf32>,
    } else {
    }
    return
  }
  func.func @transform_0(%arg0: i32, %arg1: i32) -> (i32, i32) {
    %c0_i32 = arith.constant 0 : i32
    %c0_i32_0 = arith.constant 0 : i32
    return %arg1, %c0_i32 : i32, i32
  }
  func.func @transform_1(%arg0: i32, %arg1: i32) -> (i32, i32) {
    %c0_i32 = arith.constant 0 : i32
    %c0_i32_0 = arith.constant 0 : i32
    %c0_i32_1 = arith.constant 0 : i32
    return %c0_i32, %c0_i32_0 : i32, i32
  }
  func.func @transform_2(%arg0: i32, %arg1: i32) -> (i32, i32, i32) {
    %c0_i32 = arith.constant 0 : i32
    %c0_i32_0 = arith.constant 0 : i32
    %c0_i32_1 = arith.constant 0 : i32
    return %arg0, %c0_i32, %c0_i32_0 : i32, i32, i32
  }
  func.func @transform_3(%arg0: i32, %arg1: i32) -> (i32, i32, i32) {
    %c0_i32 = arith.constant 0 : i32
    %c0_i32_0 = arith.constant 0 : i32
    %c0_i32_1 = arith.constant 0 : i32
    return %arg0, %c0_i32, %c0_i32_0 : i32, i32, i32
  }
  func.func @transform_4(%arg0: i32, %arg1: i32) -> (i32, i32) {
    %c0_i32 = arith.constant 0 : i32
    %c0_i32_0 = arith.constant 0 : i32
    %c0_i32_1 = arith.constant 0 : i32
    return %c0_i32, %c0_i32_0 : i32, i32
  }
  func.func @transform_5(%arg0: i32, %arg1: i32) -> (i32, i32) {
    %c0_i32 = arith.constant 0 : i32
    %c0_i32_0 = arith.constant 0 : i32
    %c0_i32_1 = arith.constant 0 : i32
    return %c0_i32, %c0_i32_0 : i32, i32
  }
  func.func @transform_6(%arg0: i32, %arg1: i32) -> (i32, i32) {
    %c0_i32 = arith.constant 0 : i32
    %c0_i32_0 = arith.constant 0 : i32
    %c0_i32_1 = arith.constant 0 : i32
    return %c0_i32, %c0_i32_0 : i32, i32
  }
  func.func @transform_7(%arg0: i32, %arg1: i32) -> (i32, i32) {
    %c0_i32 = arith.constant 0 : i32
    %c0_i32_0 = arith.constant 0 : i32
    %c0_i32_1 = arith.constant 0 : i32
    return %c0_i32, %c0_i32_0 : i32, i32
  }
}

</mosaic_0001>

<llo_original>
// kernel: gcn_forward_fused.1
$region0: #{gcn_forward_fused.1}
  #allocation0 [shape = 'u32[]', space=smem, size = 0x4, offset = 0x4, fixed_abs, tag = 'smem constant byte address 0x4 - core index']
  #allocation1 [shape = 'u32[144,128]{1,0:T(1,128)}', space=vmem, size = 0x12000, scoped, tag = 'internal scratch']
  #allocation2 [shape = 'bf16[128,128]{1,0:T(16,128)(2,1)}', space=vmem, size = 0x8000, scoped, tag = 'scratch operand']
  #allocation3 [shape = 'bf16[128,128]{1,0:T(16,128)(2,1)}', space=vmem, size = 0x8000, scoped, tag = 'scratch operand']
  %s0 = inlined_call_operand.vmem [shape: bf16[128,128], index: 0, kind: input, shape index: {}]
  %s1 = inlined_call_operand.vmem [shape: bf16[128,128], index: 1, kind: input, shape index: {}]
  %s2 = inlined_call_operand.vmem [shape: bf16[3,128,128], index: 2, kind: input, shape index: {}]
  %s3 = inlined_call_operand.vmem [shape: f32[3,1,128], index: 3, kind: input, shape index: {}]
  %s4 = inlined_call_operand.vmem [shape: bf16[8,128], index: 4, kind: input, shape index: {}]
  %s5 = inlined_call_operand.vmem [shape: bf16[128,128], index: 5, kind: input, shape index: {}]
  %s6 = inlined_call_operand.vmem [shape: f32[1,128], index: 6, kind: input, shape index: {}]
  %s7 = inlined_call_operand.vmem [shape: f32[8,128], index: 7, kind: output, shape index: {}]
  %s8 = sld [smem:[#allocation0]]
  $region73: #{gcn_forward_fused.1} parent=0
    _
  %s10 = ssub.s32 1, %s8
  %s11 = scalar_select 0, %s10, %s8
  loop: start=0, step=1, limit=5
  $region2: #{gcn_forward_fused.1} parent=0 // loop_pre_header
    _
  $region3: #{gcn_forward_fused.1} parent=0 // loop_header
    %s13 = sphi 0, %s17
    %p14 = scmp.ge.s32.totalorder %s13, 5
    %s20 = sphi 0, %s32
    %s21 = sphi 0, %s28
    %s22 = sphi 0, %s20
    %s23 = sphi 0, %s21
    %s24 = sphi 0, %s22
    %s25 = sphi 0, %s23
    %s35 = sphi 0, %s37
    %s38 = sphi 0, %s35
    %s39 = sphi 0, %s38
    %s55 = sphi 0, %s39
    %s59 = sphi 0, %s59
    %s61 = sphi 0, %s59
    %s62 = sphi 0, %s61
    %s76 = sphi 0, %s62
    %s82 = sphi 0, %s84
    %s85 = sphi 0, %s82
    %s86 = sphi 0, %s85
    %s102 = sphi 0, %s86
    %s108 = sphi 0, %s110
    %s111 = sphi 0, %s108
    %s112 = sphi 0, %s111
    %s128 = sphi 0, %s112
    %s132 = sphi 0, %s132
    %s134 = sphi 0, %s132
    %s135 = sphi 0, %s134
    %s149 = sphi 0, %s135
    %s153 = sphi 0, %s153
    %s155 = sphi 0, %s153
    %s156 = sphi 0, %s155
    %s170 = sphi 0, %s156
    %s174 = sphi 0, %s174
    %s176 = sphi 0, %s174
    %s177 = sphi 0, %s176
    %s191 = sphi 0, %s177
    %s195 = sphi 0, %s195
    %s197 = sphi 0, %s195
    %s198 = sphi 0, %s197
    %s212 = sphi 0, %s198
  $region4: #{gcn_forward_fused.1} parent=0 // loop_header_branch
    %16 = sbr.rel (%p14) target = $region8
  $region5: #{gcn_forward_fused.1} parent=0 // loop_body
    %s18 = ssub.s32 %s13, 1
    %s19 = ssub.s32 %s13, 2
    %s26 = sadd.s32 1, %s21
    %p27 = scmp.ge.s32.totalorder %s26, 1
    %s28 = scalar_select %p27, 0, %s26
    %s29 = sadd.s32 1, %s20
    %s30 = scalar_select %p27, %s29, %s20
    %p31 = scmp.ge.s32.totalorder %s30, 3
    %s32 = scalar_select %p31, 0, %s30
    %s33 = ssub.s32 %s21, %s28
    %p34 = scmp.eq.s32.totalorder %s33, 0
    %s36 = sadd.s32 %s35, 1
    %s37 = scalar_select %p34, %s35, %s36
    %p40 = pneg %p34
    %p41 = scmp.eq.s32.totalorder %s13, 2
    %p42 = por %p40, %p41
    %p43 = scmp.ne.s32.totalorder %s35, %s38
    %p44 = scmp.eq.s32.totalorder %s13, 0
    %p45 = por %p43, %p44
    %p46 = scmp.ne.s32.totalorder %s35, %s38
    %p47 = scmp.eq.s32.totalorder %s18, 2
    %p48 = por %p46, %p47
    %p49 = scmp.ne.s32.totalorder %s38, %s39
    %p50 = scmp.eq.s32.totalorder %s18, 0
    %p51 = por %p49, %p50
    %p52 = scmp.ne.s32.totalorder %s38, %s39
    %p53 = scmp.eq.s32.totalorder %s19, 2
    %p54 = por %p52, %p53
    %p56 = scmp.ne.s32.totalorder %s39, %s55
    %p57 = scmp.eq.s32.totalorder %s19, 0
    %p58 = por %p56, %p57
    %s60 = sadd.s32 %s59, 1
    %p63 = scmp.eq.s32.totalorder %s13, 2
    %p64 = scmp.ne.s32.totalorder %s59, %s61
    %p65 = scmp.eq.s32.totalorder %s13, 0
    %p66 = por %p64, %p65
    %p67 = scmp.ne.s32.totalorder %s59, %s61
    %p68 = scmp.eq.s32.totalorder %s18, 2
    %p69 = por %p67, %p68
    %p70 = scmp.ne.s32.totalorder %s61, %s62
    %p71 = scmp.eq.s32.totalorder %s18, 0
    %p72 = por %p70, %p71
    %p73 = scmp.ne.s32.totalorder %s61, %s62
    %p74 = scmp.eq.s32.totalorder %s19, 2
    %p75 = por %p73, %p74
    %p77 = scmp.ne.s32.totalorder %s62, %s76
    %p78 = scmp.eq.s32.totalorder %s19, 0
    %p79 = por %p77, %p78
    %s80 = ssub.s32 %s20, %s32
    %p81 = scmp.eq.s32.totalorder %s80, 0
    %s83 = sadd.s32 %s82, 1
    %s84 = scalar_select %p81, %s82, %s83
    %p87 = pneg %p81
    %p88 = scmp.eq.s32.totalorder %s13, 2
    %p89 = por %p87, %p88
    %p90 = scmp.ne.s32.totalorder %s82, %s85
    %p91 = scmp.eq.s32.totalorder %s13, 0
    %p92 = por %p90, %p91
    %p93 = scmp.ne.s32.totalorder %s82, %s85
    %p94 = scmp.eq.s32.totalorder %s18, 2
    %p95 = por %p93, %p94
    %p96 = scmp.ne.s32.totalorder %s85, %s86
    %p97 = scmp.eq.s32.totalorder %s18, 0
    %p98 = por %p96, %p97
    %p99 = scmp.ne.s32.totalorder %s85, %s86
    %p100 = scmp.eq.s32.totalorder %s19, 2
    %p101 = por %p99, %p100
    %p103 = scmp.ne.s32.totalorder %s86, %s102
    %p104 = scmp.eq.s32.totalorder %s19, 0
    %p105 = por %p103, %p104
    %s106 = ssub.s32 %s20, %s32
    %p107 = scmp.eq.s32.totalorder %s106, 0
    %s109 = sadd.s32 %s108, 1
    %s110 = scalar_select %p107, %s108, %s109
    %p113 = pneg %p107
    %p114 = scmp.eq.s32.totalorder %s13, 2
    %p115 = por %p113, %p114
    %p116 = scmp.ne.s32.totalorder %s108, %s111
    %p117 = scmp.eq.s32.totalorder %s13, 0
    %p118 = por %p116, %p117
    %p119 = scmp.ne.s32.totalorder %s108, %s111
    %p120 = scmp.eq.s32.totalorder %s18, 2
    %p121 = por %p119, %p120
    %p122 = scmp.ne.s32.totalorder %s111, %s112
    %p123 = scmp.eq.s32.totalorder %s18, 0
    %p124 = por %p122, %p123
    %p125 = scmp.ne.s32.totalorder %s111, %s112
    %p126 = scmp.eq.s32.totalorder %s19, 2
    %p127 = por %p125, %p126
    %p129 = scmp.ne.s32.totalorder %s112, %s128
    %p130 = scmp.eq.s32.totalorder %s19, 0
    %p131 = por %p129, %p130
    %s133 = sadd.s32 %s132, 1
    %p136 = scmp.eq.s32.totalorder %s13, 2
    %p137 = scmp.ne.s32.totalorder %s132, %s134
    %p138 = scmp.eq.s32.totalorder %s13, 0
    %p139 = por %p137, %p138
    %p140 = scmp.ne.s32.totalorder %s132, %s134
    %p141 = scmp.eq.s32.totalorder %s18, 2
    %p142 = por %p140, %p141
    %p143 = scmp.ne.s32.totalorder %s134, %s135
    %p144 = scmp.eq.s32.totalorder %s18, 0
    %p145 = por %p143, %p144
    %p146 = scmp.ne.s32.totalorder %s134, %s135
    %p147 = scmp.eq.s32.totalorder %s19, 2
    %p148 = por %p146, %p147
    %p150 = scmp.ne.s32.totalorder %s135, %s149
    %p151 = scmp.eq.s32.totalorder %s19, 0
    %p152 = por %p150, %p151
    %s154 = sadd.s32 %s153, 1
    %p157 = scmp.eq.s32.totalorder %s13, 2
    %p158 = scmp.ne.s32.totalorder %s153, %s155
    %p159 = scmp.eq.s32.totalorder %s13, 0
    %p160 = por %p158, %p159
    %p161 = scmp.ne.s32.totalorder %s153, %s155
    %p162 = scmp.eq.s32.totalorder %s18, 2
    %p163 = por %p161, %p162
    %p164 = scmp.ne.s32.totalorder %s155, %s156
    %p165 = scmp.eq.s32.totalorder %s18, 0
    %p166 = por %p164, %p165
    %p167 = scmp.ne.s32.totalorder %s155, %s156
    %p168 = scmp.eq.s32.totalorder %s19, 2
    %p169 = por %p167, %p168
    %p171 = scmp.ne.s32.totalorder %s156, %s170
    %p172 = scmp.eq.s32.totalorder %s19, 0
    %p173 = por %p171, %p172
    %s175 = sadd.s32 %s174, 1
    %p178 = scmp.eq.s32.totalorder %s13, 2
    %p179 = scmp.ne.s32.totalorder %s174, %s176
    %p180 = scmp.eq.s32.totalorder %s13, 0
    %p181 = por %p179, %p180
    %p182 = scmp.ne.s32.totalorder %s174, %s176
    %p183 = scmp.eq.s32.totalorder %s18, 2
    %p184 = por %p182, %p183
    %p185 = scmp.ne.s32.totalorder %s176, %s177
    %p186 = scmp.eq.s32.totalorder %s18, 0
    %p187 = por %p185, %p186
    %p188 = scmp.ne.s32.totalorder %s176, %s177
    %p189 = scmp.eq.s32.totalorder %s19, 2
    %p190 = por %p188, %p189
    %p192 = scmp.ne.s32.totalorder %s177, %s191
    %p193 = scmp.eq.s32.totalorder %s19, 0
    %p194 = por %p192, %p193
    %s196 = sadd.s32 %s195, 1
    %p199 = scmp.eq.s32.totalorder %s13, 2
    %p200 = scmp.ne.s32.totalorder %s195, %s197
    %p201 = scmp.eq.s32.totalorder %s13, 0
    %p202 = por %p200, %p201
    %p203 = scmp.ne.s32.totalorder %s195, %s197
    %p204 = scmp.eq.s32.totalorder %s18, 2
    %p205 = por %p203, %p204
    %p206 = scmp.ne.s32.totalorder %s197, %s198
    %p207 = scmp.eq.s32.totalorder %s18, 0
    %p208 = por %p206, %p207
    %p209 = scmp.ne.s32.totalorder %s197, %s198
    %p210 = scmp.eq.s32.totalorder %s19, 2
    %p211 = por %p209, %p210
    %p213 = scmp.ne.s32.totalorder %s198, %s212
    %p214 = scmp.eq.s32.totalorder %s19, 0
    %p215 = por %p213, %p214
    %p216 = scmp.le.s32.totalorder 1, %s13
    %p217 = scmp.lt.s32.totalorder %s13, 4
    %p218 = pnand %p216, %p217
    %p219 = pneg %p218
    // Predicated region
    $region9: #{gcn_forward_fused.1} parent=5 // pred_check
      _
    $region10: #{gcn_forward_fused.1} parent=5 // pred_check_branch
      %221 = sbr.rel (%p218) target = $region12
    $region11: #{gcn_forward_fused.1} parent=5 // pred_region
      %s222 = ssub.s32 %s13, 1
      // Predicated region
      $region13: #{gcn_forward_fused.1} parent=11 // pred_check
        %p223 = pneg %p51
      $region14: #{gcn_forward_fused.1} parent=11 // pred_check_branch
        %225 = sbr.rel (%p223) target = $region16
      $region15: #{gcn_forward_fused.1} parent=11 // pred_region
        %s226 = smul.u32 16, %s23
        %p227 = scmp.lt.s32.totalorder %s226, 15
        %s228 = scalar_select %p227, %s226, 15
        %s229 = smul.addr %s228, 4
        %s230 = scalar_lea.vmem %s0, %s229
        %s231 = smul.u32 16, %s23
      $region16: #{gcn_forward_fused.1} parent=11 // pred_fallthru
        _
      // Predicated region
      $region17: #{gcn_forward_fused.1} parent=11 // pred_check
        %p232 = pneg %p72
      $region18: #{gcn_forward_fused.1} parent=11 // pred_check_branch
        %234 = sbr.rel (%p232) target = $region20
      $region19: #{gcn_forward_fused.1} parent=11 // pred_region
        _
      $region20: #{gcn_forward_fused.1} parent=11 // pred_fallthru
        _
      // Predicated region
      $region21: #{gcn_forward_fused.1} parent=11 // pred_check
        %p235 = pneg %p145
      $region22: #{gcn_forward_fused.1} parent=11 // pred_check_branch
        %237 = sbr.rel (%p235) target = $region24
      $region23: #{gcn_forward_fused.1} parent=11 // pred_region
        _
      $region24: #{gcn_forward_fused.1} parent=11 // pred_fallthru
        _
      // Predicated region
      $region25: #{gcn_forward_fused.1} parent=11 // pred_check
        %p238 = pneg %p166
      $region26: #{gcn_forward_fused.1} parent=11 // pred_check_branch
        %240 = sbr.rel (%p238) target = $region28
      $region27: #{gcn_forward_fused.1} parent=11 // pred_region
        _
      $region28: #{gcn_forward_fused.1} parent=11 // pred_fallthru
        _
      // Predicated region
      $region29: #{gcn_forward_fused.1} parent=11 // pred_check
        %p241 = pneg %p187
      $region30: #{gcn_forward_fused.1} parent=11 // pred_check_branch
        %243 = sbr.rel (%p241) target = $region32
      $region31: #{gcn_forward_fused.1} parent=11 // pred_region
        _
      $region32: #{gcn_forward_fused.1} parent=11 // pred_fallthru
        _
    $region12: #{gcn_forward_fused.1} parent=5 // pred_fallthru
      _
    %p244 = scmp.lt.s32.totalorder %s13, 3
    // Predicated region
    $region33: #{gcn_forward_fused.1} parent=5 // pred_check
      %p245 = pneg %p244
    $region34: #{gcn_forward_fused.1} parent=5 // pred_check_branch
      %247 = sbr.rel (%p245) target = $region36
    $region35: #{gcn_forward_fused.1} parent=5 // pred_region
      // Predicated region
      $region37: #{gcn_forward_fused.1} parent=35 // pred_check
        %p248 = pneg %p92
      $region38: #{gcn_forward_fused.1} parent=35 // pred_check_branch
        %250 = sbr.rel (%p248) target = $region40
      $region39: #{gcn_forward_fused.1} parent=35 // pred_region
        %p251 = scmp.lt.s32.totalorder %s20, 2
        %s252 = scalar_select %p251, %s20, 2
        %s253 = smul.addr %s252, 16
        %s254 = smul.addr %s253, 4
        %s255 = scalar_lea.vmem %s2, %s254
      $region40: #{gcn_forward_fused.1} parent=35 // pred_fallthru
        _
      // Predicated region
      $region41: #{gcn_forward_fused.1} parent=35 // pred_check
        %p256 = pneg %p118
      $region42: #{gcn_forward_fused.1} parent=35 // pred_check_branch
        %258 = sbr.rel (%p256) target = $region44
      $region43: #{gcn_forward_fused.1} parent=35 // pred_region
        %p259 = scmp.lt.s32.totalorder %s20, 2
        %s260 = scalar_select %p259, %s20, 2
        %s261 = scalar_lea.vmem %s3, %s260
      $region44: #{gcn_forward_fused.1} parent=35 // pred_fallthru
        _
    $region36: #{gcn_forward_fused.1} parent=5 // pred_fallthru
      _
    %p262 = scmp.le.s32.totalorder 1, %s13
    %p263 = scmp.lt.s32.totalorder %s13, 4
    %p264 = pnand %p262, %p263
    %p265 = pneg %p264
    // Predicated region
    $region45: #{gcn_forward_fused.1} parent=5 // pred_check
      _
    $region46: #{gcn_forward_fused.1} parent=5 // pred_check_branch
      %267 = sbr.rel (%p264) target = $region48
    $region47: #{gcn_forward_fused.1} parent=5 // pred_region
      %s268 = ssub.s32 %s13, 1
      %s269 = smul.u32 16, %s23
      %p270 = scmp.lt.s32.totalorder %s269, 15
      %s271 = scalar_select %p270, %s269, 15
      %s272 = smul.addr %s271, 4
      %s273 = scalar_lea.vmem %s0, %s272
      %p274 = pneg %p51
      %p275 = pneg %p48
      %p276 = pneg %p72
      %p277 = pneg %p69
      %p278 = scmp.lt.s32.totalorder %s22, 2
      %s279 = scalar_select %p278, %s22, 2
      %s280 = smul.addr %s279, 16
      %s281 = smul.addr %s280, 4
      %s282 = scalar_lea.vmem %s2, %s281
      %p283 = pneg %p98
      %p284 = pneg %p95
      %p285 = scmp.lt.s32.totalorder %s22, 2
      %s286 = scalar_select %p285, %s22, 2
      %s287 = scalar_lea.vmem %s3, %s286
      %p288 = pneg %p124
      %p289 = pneg %p121
      %p290 = pneg %p145
      %p291 = pneg %p142
      %p292 = pneg %p166
      %p293 = pneg %p163
      %p294 = pneg %p187
      %p295 = pneg %p184
      %p296 = pneg %p208
      %p297 = pneg %p205
      %s298 = smul.u32 16, %s23
      %p299 = scmp.lt.s32.totalorder %s298, 15
      %s300 = scalar_select %p299, %s298, 15
      %s301 = smul.addr %s300, 4
      %s302 = scalar_lea.vmem %s0, %s301
      %s303 = smul.u32 16, %s23
      %p304 = scmp.lt.s32.totalorder %s22, 2
      %s305 = scalar_select %p304, %s22, 2
      %s306 = smul.addr %s305, 16
      %s307 = smul.addr %s306, 4
      %s308 = scalar_lea.vmem %s2, %s307
      %p309 = scmp.lt.s32.totalorder %s22, 2
      %s310 = scalar_select %p309, %s22, 2
      %s311 = scalar_lea.vmem %s3, %s310
      %p313 = scmp.eq.s32.totalorder %s22, 0
      %p314 = scmp.eq.s32.totalorder %s23, 0
      %p315 = pnand %p313, %p314
      %p316 = pneg %p315
      // Predicated region
      $region49: #{gcn_forward_fused.1} parent=47 // pred_check
        _
      $region50: #{gcn_forward_fused.1} parent=47 // pred_check_branch
        %318 = sbr.rel (%p315) target = $region52
      $region51: #{gcn_forward_fused.1} parent=47 // pred_region
        %v319 = vld [vmem:[%s1] sm:$0xf]
        %v320 = vld [vmem:[%s1 + $0x4] sm:$0xf]
        %v321 = vld [vmem:[%s1 + $0x8] sm:$0xf]
        %v322 = vld [vmem:[%s1 + $0xc] sm:$0xf]
        %v323 = vld [vmem:[%s1 + $0x10] sm:$0xf]
        %v324 = vld [vmem:[%s1 + $0x14] sm:$0xf]
        %v325 = vld [vmem:[%s1 + $0x18] sm:$0xf]
        %v326 = vld [vmem:[%s1 + $0x1c] sm:$0xf]
        %v327 = vld [vmem:[%s1 + $0x20] sm:$0xf]
        %v328 = vld [vmem:[%s1 + $0x24] sm:$0xf]
        %v329 = vld [vmem:[%s1 + $0x28] sm:$0xf]
        %v330 = vld [vmem:[%s1 + $0x2c] sm:$0xf]
        %v331 = vld [vmem:[%s1 + $0x30] sm:$0xf]
        %v332 = vld [vmem:[%s1 + $0x34] sm:$0xf]
        %v333 = vld [vmem:[%s1 + $0x38] sm:$0xf]
        %v334 = vld [vmem:[%s1 + $0x3c] sm:$0xf]
        %v351 = vunpack.c.l.b16 %v319
        %v352 = vunpack.c.l.b16 %v320
        %v353 = vunpack.c.l.b16 %v321
        %v354 = vunpack.c.l.b16 %v322
        %v355 = vunpack.c.l.b16 %v323
        %v356 = vunpack.c.l.b16 %v324
        %v357 = vunpack.c.l.b16 %v325
        %v358 = vunpack.c.l.b16 %v326
        %v359 = vunpack.c.l.b16 %v327
        %v360 = vunpack.c.l.b16 %v328
        %v361 = vunpack.c.l.b16 %v329
        %v362 = vunpack.c.l.b16 %v330
        %v363 = vunpack.c.l.b16 %v331
        %v364 = vunpack.c.l.b16 %v332
        %v365 = vunpack.c.l.b16 %v333
        %v366 = vunpack.c.l.b16 %v334
        %v367 = vpack.c.b16 %v352, %v351
        %v368 = vpack.c.b16 %v354, %v353
        %v369 = vpack.c.b16 %v356, %v355
        %v370 = vpack.c.b16 %v358, %v357
        %v371 = vpack.c.b16 %v360, %v359
        %v372 = vpack.c.b16 %v362, %v361
        %v373 = vpack.c.b16 %v364, %v363
        %v374 = vpack.c.b16 %v366, %v365
        %383 = vst [vmem:[#allocation2] sm:$0xff] %v367
        %384 = vst [vmem:[#allocation2 + $0x8] sm:$0xff] %v368
        %385 = vst [vmem:[#allocation2 + $0x10] sm:$0xff] %v369
        %386 = vst [vmem:[#allocation2 + $0x18] sm:$0xff] %v370
        %387 = vst [vmem:[#allocation2 + $0x20] sm:$0xff] %v371
        %388 = vst [vmem:[#allocation2 + $0x28] sm:$0xff] %v372
        %389 = vst [vmem:[#allocation2 + $0x30] sm:$0xff] %v373
        %390 = vst [vmem:[#allocation2 + $0x38] sm:$0xff] %v374
      $region52: #{gcn_forward_fused.1} parent=47 // pred_fallthru
        _
      // Predicated region
      $region53: #{gcn_forward_fused.1} parent=47 // pred_check
        %p391 = pneg %p314
      $region54: #{gcn_forward_fused.1} parent=47 // pred_check_branch
        %393 = sbr.rel (%p391) target = $region56
      $region55: #{gcn_forward_fused.1} parent=47 // pred_region
        %v394 = vld [vmem:[#allocation2] sm:$0xff]
        %v395 = vld [vmem:[#allocation2 + $0x8] sm:$0xff]
        %v396 = vld [vmem:[#allocation2 + $0x10] sm:$0xff]
        %v397 = vld [vmem:[#allocation2 + $0x18] sm:$0xff]
        %v398 = vld [vmem:[#allocation2 + $0x20] sm:$0xff]
        %v399 = vld [vmem:[#allocation2 + $0x28] sm:$0xff]
        %v400 = vld [vmem:[#allocation2 + $0x30] sm:$0xff]
        %v401 = vld [vmem:[#allocation2 + $0x38] sm:$0xff]
        %v402 = vld [vmem:[%s308] sm:$0xf]
        %v403 = vld [vmem:[%s308 + $0x4] sm:$0xf]
        %v404 = vld [vmem:[%s308 + $0x8] sm:$0xf]
        %v405 = vld [vmem:[%s308 + $0xc] sm:$0xf]
        %v406 = vld [vmem:[%s308 + $0x10] sm:$0xf]
        %v407 = vld [vmem:[%s308 + $0x14] sm:$0xf]
        %v408 = vld [vmem:[%s308 + $0x18] sm:$0xf]
        %v409 = vld [vmem:[%s308 + $0x1c] sm:$0xf]
        %v410 = vld [vmem:[%s308 + $0x20] sm:$0xf]
        %v411 = vld [vmem:[%s308 + $0x24] sm:$0xf]
        %v412 = vld [vmem:[%s308 + $0x28] sm:$0xf]
        %v413 = vld [vmem:[%s308 + $0x2c] sm:$0xf]
        %v414 = vld [vmem:[%s308 + $0x30] sm:$0xf]
        %v415 = vld [vmem:[%s308 + $0x34] sm:$0xf]
        %v416 = vld [vmem:[%s308 + $0x38] sm:$0xf]
        %v417 = vld [vmem:[%s308 + $0x3c] sm:$0xf]
        %v434 = vunpack.c.l.b16 %v402
        %v435 = vunpack.c.l.b16 %v403
        %v436 = vunpack.c.l.b16 %v404
        %v437 = vunpack.c.l.b16 %v405
        %v438 = vunpack.c.l.b16 %v406
        %v439 = vunpack.c.l.b16 %v407
        %v440 = vunpack.c.l.b16 %v408
        %v441 = vunpack.c.l.b16 %v409
        %v442 = vunpack.c.l.b16 %v410
        %v443 = vunpack.c.l.b16 %v411
        %v444 = vunpack.c.l.b16 %v412
        %v445 = vunpack.c.l.b16 %v413
        %v446 = vunpack.c.l.b16 %v414
        %v447 = vunpack.c.l.b16 %v415
        %v448 = vunpack.c.l.b16 %v416
        %v449 = vunpack.c.l.b16 %v417
        %v450 = vpack.c.b16 %v435, %v434
        %v451 = vpack.c.b16 %v437, %v436
        %v452 = vpack.c.b16 %v439, %v438
        %v453 = vpack.c.b16 %v441, %v440
        %v454 = vpack.c.b16 %v443, %v442
        %v455 = vpack.c.b16 %v445, %v444
        %v456 = vpack.c.b16 %v447, %v446
        %v457 = vpack.c.b16 %v449, %v448
        %466 = vmatprep.subr.bf16.mxu0 0
        %467 = vmatpush1.bf16.msra.mxu0 %v450
        %468 = vmatprep.subr.bf16.mxu0 0
        %469 = vmatpush1.bf16.msra.mxu0 %v451
        %470 = vmatprep.subr.bf16.mxu0 0
        %471 = vmatpush1.bf16.msra.mxu0 %v452
        %472 = vmatprep.subr.bf16.mxu0 0
        %473 = vmatpush1.bf16.msra.mxu0 %v453
        %474 = vmatprep.subr.bf16.mxu0 0
        %475 = vmatpush1.bf16.msra.mxu0 %v454
        %476 = vmatprep.subr.bf16.mxu0 0
        %477 = vmatpush1.bf16.msra.mxu0 %v455
        %478 = vmatprep.subr.bf16.mxu0 0
        %479 = vmatpush1.bf16.msra.mxu0 %v456
        %480 = vmatprep.subr.bf16.mxu0 0
        %481 = vmatpush1.bf16.msra.mxu0 %v457
        %482 = vmatprep.subr.bf16.mxu0 0
        %483 = vmatpush1.bf16.msra.mxu0 0
        %484 = vmatprep.subr.bf16.mxu0 0
        %485 = vmatpush1.bf16.msra.mxu0 0
        %486 = vmatprep.subr.bf16.mxu0 0
        %487 = vmatpush1.bf16.msra.mxu0 0
        %488 = vmatprep.subr.bf16.mxu0 0
        %489 = vmatpush1.bf16.msra.mxu0 0
        %490 = vmatprep.subr.bf16.mxu0 0
        %491 = vmatpush1.bf16.msra.mxu0 0
        %492 = vmatprep.subr.bf16.mxu0 0
        %493 = vmatpush1.bf16.msra.mxu0 0
        %494 = vmatprep.subr.bf16.mxu0 0
        %495 = vmatpush1.bf16.msra.mxu0 0
        %496 = vmatprep.subr.bf16.mxu0 0
        %497 = vmatpush1.bf16.msra.mxu0 0
        %498 = vmatprep.mubr.bf16.mxu0 0
        %499 = vmatmul.mubr.bf16.gmra.mrb[0].mxu0 %v394
        %v500 = vpop.f32.mrb[0].mxu0
        %v501 = vadd.f32 0.0, %v500
        %v502 = vpop.f32.mrb[0].mxu0
        %v503 = vpop.f32.mrb[0].mxu0
        %v504 = vadd.f32 0.0, %v503
        %v505 = vpop.f32.mrb[0].mxu0
        %506 = vmatprep.mubr.bf16.mxu0 0
        %507 = vmatmul.mubr.bf16.gmra.mrb[0].mxu0 %v395
        %v508 = vpop.f32.mrb[0].mxu0
        %v509 = vadd.f32 0.0, %v508
        %v510 = vpop.f32.mrb[0].mxu0
        %v511 = vpop.f32.mrb[0].mxu0
        %v512 = vadd.f32 0.0, %v511
        %v513 = vpop.f32.mrb[0].mxu0
        %514 = vmatprep.mubr.bf16.mxu0 0
        %515 = vmatmul.mubr.bf16.gmra.mrb[0].mxu0 %v396
        %v516 = vpop.f32.mrb[0].mxu0
        %v517 = vadd.f32 0.0, %v516
        %v518 = vpop.f32.mrb[0].mxu0
        %v519 = vpop.f32.mrb[0].mxu0
        %v520 = vadd.f32 0.0, %v519
        %v521 = vpop.f32.mrb[0].mxu0
        %522 = vmatprep.mubr.bf16.mxu0 0
        %523 = vmatmul.mubr.bf16.gmra.mrb[0].mxu0 %v397
        %v524 = vpop.f32.mrb[0].mxu0
        %v525 = vadd.f32 0.0, %v524
        %v526 = vpop.f32.mrb[0].mxu0
        %v527 = vpop.f32.mrb[0].mxu0
        %v528 = vadd.f32 0.0, %v527
        %v529 = vpop.f32.mrb[0].mxu0
        %530 = vmatprep.mubr.bf16.mxu0 0
        %531 = vmatmul.mubr.bf16.gmra.mrb[0].mxu0 %v398
        %v532 = vpop.f32.mrb[0].mxu0
        %v533 = vadd.f32 0.0, %v532
        %v534 = vpop.f32.mrb[0].mxu0
        %v535 = vpop.f32.mrb[0].mxu0
        %v536 = vadd.f32 0.0, %v535
        %v537 = vpop.f32.mrb[0].mxu0
        %538 = vmatprep.mubr.bf16.mxu0 0
        %539 = vmatmul.mubr.bf16.gmra.mrb[0].mxu0 %v399
        %v540 = vpop.f32.mrb[0].mxu0
        %v541 = vadd.f32 0.0, %v540
        %v542 = vpop.f32.mrb[0].mxu0
        %v543 = vpop.f32.mrb[0].mxu0
        %v544 = vadd.f32 0.0, %v543
        %v545 = vpop.f32.mrb[0].mxu0
        %546 = vmatprep.mubr.bf16.mxu0 0
        %547 = vmatmul.mubr.bf16.gmra.mrb[0].mxu0 %v400
        %v548 = vpop.f32.mrb[0].mxu0
        %v549 = vadd.f32 0.0, %v548
        %v550 = vpop.f32.mrb[0].mxu0
        %v551 = vpop.f32.mrb[0].mxu0
        %v552 = vadd.f32 0.0, %v551
        %v553 = vpop.f32.mrb[0].mxu0
        %554 = vmatprep.mubr.bf16.mxu0 0
        %555 = vmatmul.mubr.bf16.gmra.mrb[0].mxu0 %v401
        %v556 = vpop.f32.mrb[0].mxu0
        %v557 = vadd.f32 0.0, %v556
        %v558 = vpop.f32.mrb[0].mxu0
        %v559 = vpop.f32.mrb[0].mxu0
        %v560 = vadd.f32 0.0, %v559
        %v561 = vpop.f32.mrb[0].mxu0
        %562 = vdwg.mxu0
        %v563 = vpack.c.bf16 %v504, %v501
        %v564 = vpack.c.bf16 %v512, %v509
        %v565 = vpack.c.bf16 %v520, %v517
        %v566 = vpack.c.bf16 %v528, %v525
        %v567 = vpack.c.bf16 %v536, %v533
        %v568 = vpack.c.bf16 %v544, %v541
        %v569 = vpack.c.bf16 %v552, %v549
        %v570 = vpack.c.bf16 %v560, %v557
        %571 = vst [vmem:[#allocation3] sm:$0xff] %v563
        %572 = vst [vmem:[#allocation3 + $0x8] sm:$0xff] %v564
        %573 = vst [vmem:[#allocation3 + $0x10] sm:$0xff] %v565
        %574 = vst [vmem:[#allocation3 + $0x18] sm:$0xff] %v566
        %575 = vst [vmem:[#allocation3 + $0x20] sm:$0xff] %v567
        %576 = vst [vmem:[#allocation3 + $0x28] sm:$0xff] %v568
        %577 = vst [vmem:[#allocation3 + $0x30] sm:$0xff] %v569
        %578 = vst [vmem:[#allocation3 + $0x38] sm:$0xff] %v570
      $region56: #{gcn_forward_fused.1} parent=47 // pred_fallthru
        _
      %v579 = vld [vmem:[%s302] sm:$0xf]
      %v580 = vld [vmem:[%s302 + $0x4] sm:$0xf]
      %v581 = vld [vmem:[%s302 + $0x8] sm:$0xf]
      %v582 = vld [vmem:[%s302 + $0xc] sm:$0xf]
      %v583 = vld [vmem:[%s302 + $0x10] sm:$0xf]
      %v584 = vld [vmem:[%s302 + $0x14] sm:$0xf]
      %v585 = vld [vmem:[%s302 + $0x18] sm:$0xf]
      %v586 = vld [vmem:[%s302 + $0x1c] sm:$0xf]
      %v587 = vld [vmem:[%s302 + $0x20] sm:$0xf]
      %v588 = vld [vmem:[%s302 + $0x24] sm:$0xf]
      %v589 = vld [vmem:[%s302 + $0x28] sm:$0xf]
      %v590 = vld [vmem:[%s302 + $0x2c] sm:$0xf]
      %v591 = vld [vmem:[%s302 + $0x30] sm:$0xf]
      %v592 = vld [vmem:[%s302 + $0x34] sm:$0xf]
      %v593 = vld [vmem:[%s302 + $0x38] sm:$0xf]
      %v594 = vld [vmem:[%s302 + $0x3c] sm:$0xf]
      %v595 = vld [vmem:[#allocation3] sm:$0xff]
      %v596 = vld [vmem:[#allocation3 + $0x8] sm:$0xff]
      %v597 = vld [vmem:[#allocation3 + $0x10] sm:$0xff]
      %v598 = vld [vmem:[#allocation3 + $0x18] sm:$0xff]
      %v599 = vld [vmem:[#allocation3 + $0x20] sm:$0xff]
      %v600 = vld [vmem:[#allocation3 + $0x28] sm:$0xff]
      %v601 = vld [vmem:[#allocation3 + $0x30] sm:$0xff]
      %v602 = vld [vmem:[#allocation3 + $0x38] sm:$0xff]
      %v603 = vld [vmem:[%s311] sm:$0x1]
      %v605 = vlaneseq
      %v606 = vshrl.u32 %v605, 7
      %v607 = vsub.s32 0, %v606
      %v608 = vrot.slane %v603, %v607
      %v626 = vunpack.c.l.b16 %v579
      %v627 = vunpack.c.l.b16 %v580
      %v628 = vunpack.c.l.b16 %v581
      %v629 = vunpack.c.l.b16 %v582
      %v630 = vunpack.c.l.b16 %v583
      %v631 = vunpack.c.l.b16 %v584
      %v632 = vunpack.c.l.b16 %v585
      %v633 = vunpack.c.l.b16 %v586
      %v634 = vunpack.c.l.b16 %v587
      %v635 = vunpack.c.l.b16 %v588
      %v636 = vunpack.c.l.b16 %v589
      %v637 = vunpack.c.l.b16 %v590
      %v638 = vunpack.c.l.b16 %v591
      %v639 = vunpack.c.l.b16 %v592
      %v640 = vunpack.c.l.b16 %v593
      %v641 = vunpack.c.l.b16 %v594
      %v642 = vpack.c.b16 %v627, %v626
      %v643 = vpack.c.b16 %v629, %v628
      %v644 = vpack.c.b16 %v631, %v630
      %v645 = vpack.c.b16 %v633, %v632
      %v646 = vpack.c.b16 %v635, %v634
      %v647 = vpack.c.b16 %v637, %v636
      %v648 = vpack.c.b16 %v639, %v638
      %v649 = vpack.c.b16 %v641, %v640
      %658 = vmatprep.subr.bf16.mxu0 0
      %659 = vmatpush1.bf16.msra.mxu0 %v595
      %660 = vmatprep.subr.bf16.mxu0 0
      %661 = vmatpush1.bf16.msra.mxu0 %v596
      %662 = vmatprep.subr.bf16.mxu0 0
      %663 = vmatpush1.bf16.msra.mxu0 %v597
      %664 = vmatprep.subr.bf16.mxu0 0
      %665 = vmatpush1.bf16.msra.mxu0 %v598
      %666 = vmatprep.subr.bf16.mxu0 0
      %667 = vmatpush1.bf16.msra.mxu0 %v599
      %668 = vmatprep.subr.bf16.mxu0 0
      %669 = vmatpush1.bf16.msra.mxu0 %v600
      %670 = vmatprep.subr.bf16.mxu0 0
      %671 = vmatpush1.bf16.msra.mxu0 %v601
      %672 = vmatprep.subr.bf16.mxu0 0
      %673 = vmatpush1.bf16.msra.mxu0 %v602
      %674 = vmatprep.subr.bf16.mxu0 0
      %675 = vmatpush1.bf16.msra.mxu0 0
      %676 = vmatprep.subr.bf16.mxu0 0
      %677 = vmatpush1.bf16.msra.mxu0 0
      %678 = vmatprep.subr.bf16.mxu0 0
      %679 = vmatpush1.bf16.msra.mxu0 0
      %680 = vmatprep.subr.bf16.mxu0 0
      %681 = vmatpush1.bf16.msra.mxu0 0
      %682 = vmatprep.subr.bf16.mxu0 0
      %683 = vmatpush1.bf16.msra.mxu0 0
      %684 = vmatprep.subr.bf16.mxu0 0
      %685 = vmatpush1.bf16.msra.mxu0 0
      %686 = vmatprep.subr.bf16.mxu0 0
      %687 = vmatpush1.bf16.msra.mxu0 0
      %688 = vmatprep.subr.bf16.mxu0 0
      %689 = vmatpush1.bf16.msra.mxu0 0
      %690 = vmatprep.mubr.bf16.mxu0 0
      %691 = vmatmul.mubr.bf16.gmra.mrb[0].mxu0 %v642
      %v692 = vpop.f32.mrb[0].mxu0
      %v693 = vadd.f32 %v608, %v692
      %v694 = vpop.f32.mrb[0].mxu0
      %v695 = vpop.f32.mrb[0].mxu0
      %v696 = vadd.f32 %v608, %v695
      %v697 = vpop.f32.mrb[0].mxu0
      %698 = vmatprep.mubr.bf16.mxu0 0
      %699 = vmatmul.mubr.bf16.gmra.mrb[0].mxu0 %v643
      %v700 = vpop.f32.mrb[0].mxu0
      %v701 = vadd.f32 %v608, %v700
      %v702 = vpop.f32.mrb[0].mxu0
      %v703 = vpop.f32.mrb[0].mxu0
      %v704 = vadd.f32 %v608, %v703
      %v705 = vpop.f32.mrb[0].mxu0
      %706 = vmatprep.mubr.bf16.mxu0 0
      %707 = vmatmul.mubr.bf16.gmra.mrb[0].mxu0 %v644
      %v708 = vpop.f32.mrb[0].mxu0
      %v709 = vadd.f32 %v608, %v708
      %v710 = vpop.f32.mrb[0].mxu0
      %v711 = vpop.f32.mrb[0].mxu0
      %v712 = vadd.f32 %v608, %v711
      %v713 = vpop.f32.mrb[0].mxu0
      %714 = vmatprep.mubr.bf16.mxu0 0
      %715 = vmatmul.mubr.bf16.gmra.mrb[0].mxu0 %v645
      %v716 = vpop.f32.mrb[0].mxu0
      %v717 = vadd.f32 %v608, %v716
      %v718 = vpop.f32.mrb[0].mxu0
      %v719 = vpop.f32.mrb[0].mxu0
      %v720 = vadd.f32 %v608, %v719
      %v721 = vpop.f32.mrb[0].mxu0
      %722 = vmatprep.mubr.bf16.mxu0 0
      %723 = vmatmul.mubr.bf16.gmra.mrb[0].mxu0 %v646
      %v724 = vpop.f32.mrb[0].mxu0
      %v725 = vadd.f32 %v608, %v724
      %v726 = vpop.f32.mrb[0].mxu0
      %v727 = vpop.f32.mrb[0].mxu0
      %v728 = vadd.f32 %v608, %v727
      %v729 = vpop.f32.mrb[0].mxu0
      %730 = vmatprep.mubr.bf16.mxu0 0
      %731 = vmatmul.mubr.bf16.gmra.mrb[0].mxu0 %v647
      %v732 = vpop.f32.mrb[0].mxu0
      %v733 = vadd.f32 %v608, %v732
      %v734 = vpop.f32.mrb[0].mxu0
      %v735 = vpop.f32.mrb[0].mxu0
      %v736 = vadd.f32 %v608, %v735
      %v737 = vpop.f32.mrb[0].mxu0
      %738 = vmatprep.mubr.bf16.mxu0 0
      %739 = vmatmul.mubr.bf16.gmra.mrb[0].mxu0 %v648
      %v740 = vpop.f32.mrb[0].mxu0
      %v741 = vadd.f32 %v608, %v740
      %v742 = vpop.f32.mrb[0].mxu0
      %v743 = vpop.f32.mrb[0].mxu0
      %v744 = vadd.f32 %v608, %v743
      %v745 = vpop.f32.mrb[0].mxu0
      %746 = vmatprep.mubr.bf16.mxu0 0
      %747 = vmatmul.mubr.bf16.gmra.mrb[0].mxu0 %v649
      %v748 = vpop.f32.mrb[0].mxu0
      %v749 = vadd.f32 %v608, %v748
      %v750 = vpop.f32.mrb[0].mxu0
      %v751 = vpop.f32.mrb[0].mxu0
      %v752 = vadd.f32 %v608, %v751
      %v753 = vpop.f32.mrb[0].mxu0
      %754 = vdwg.mxu0
      %p755 = scmp.lt.s32.totalorder %s22, 2
      %v756 = vmax.f32 %v693, 0.0
      %v757 = vmax.f32 %v696, 0.0
      %v758 = vmax.f32 %v701, 0.0
      %v759 = vmax.f32 %v704, 0.0
      %v760 = vmax.f32 %v709, 0.0
      %v761 = vmax.f32 %v712, 0.0
      %v762 = vmax.f32 %v717, 0.0
      %v763 = vmax.f32 %v720, 0.0
      %v764 = vmax.f32 %v725, 0.0
      %v765 = vmax.f32 %v728, 0.0
      %v766 = vmax.f32 %v733, 0.0
      %v767 = vmax.f32 %v736, 0.0
      %v768 = vmax.f32 %v741, 0.0
      %v769 = vmax.f32 %v744, 0.0
      %v770 = vmax.f32 %v749, 0.0
      %v771 = vmax.f32 %v752, 0.0
      %s772 = scalar_select %p755, 1, 0
      %v773 = vstv %s772
      %vm774 = vcmp.eq.s32.totalorder %v773, 1
      %v775 = vsel %vm774, %v756, %v693
      %v776 = vsel %vm774, %v757, %v696
      %v777 = vsel %vm774, %v758, %v701
      %v778 = vsel %vm774, %v759, %v704
      %v779 = vsel %vm774, %v760, %v709
      %v780 = vsel %vm774, %v761, %v712
      %v781 = vsel %vm774, %v762, %v717
      %v782 = vsel %vm774, %v763, %v720
      %v783 = vsel %vm774, %v764, %v725
      %v784 = vsel %vm774, %v765, %v728
      %v785 = vsel %vm774, %v766, %v733
      %v786 = vsel %vm774, %v767, %v736
      %v787 = vsel %vm774, %v768, %v741
      %v788 = vsel %vm774, %v769, %v744
      %v789 = vsel %vm774, %v770, %v749
      %v790 = vsel %vm774, %v771, %v752
      %s791 = smul.u32 %s23, 128
      %v792 = vpack.c.bf16 %v776, %v775
      %v793 = vpack.c.bf16 %v778, %v777
      %v794 = vpack.c.bf16 %v780, %v779
      %v795 = vpack.c.bf16 %v782, %v781
      %v796 = vpack.c.bf16 %v784, %v783
      %v797 = vpack.c.bf16 %v786, %v785
      %v798 = vpack.c.bf16 %v788, %v787
      %v799 = vpack.c.bf16 %v790, %v789
      %s800 = sshra.s32 %s791, 4
      %s801 = sand.u32 %s791, 15
      %s802 = smul.addr %s800, 8
      %s803 = scalar_lea.vmem [#allocation2], %s802
      %804 = vst [vmem:[%s803] sm:$0xff] %v792
      %805 = vst [vmem:[%s803 + $0x8] sm:$0xff] %v793
      %806 = vst [vmem:[%s803 + $0x10] sm:$0xff] %v794
      %807 = vst [vmem:[%s803 + $0x18] sm:$0xff] %v795
      %808 = vst [vmem:[%s803 + $0x20] sm:$0xff] %v796
      %809 = vst [vmem:[%s803 + $0x28] sm:$0xff] %v797
      %810 = vst [vmem:[%s803 + $0x30] sm:$0xff] %v798
      %811 = vst [vmem:[%s803 + $0x38] sm:$0xff] %v799
      %p812 = scmp.eq.s32.totalorder %s22, 2
      %p813 = pnand %p812, %p314
      %p814 = pneg %p813
      // Predicated region
      $region57: #{gcn_forward_fused.1} parent=47 // pred_check
        _
      $region58: #{gcn_forward_fused.1} parent=47 // pred_check_branch
        %816 = sbr.rel (%p813) target = $region60
      $region59: #{gcn_forward_fused.1} parent=47 // pred_region
        %v817 = vld [vmem:[%s4] sm:$0xf]
        %v818 = vld [vmem:[#allocation2] sm:$0xff]
        %v819 = vld [vmem:[#allocation2 + $0x8] sm:$0xff]
        %v820 = vld [vmem:[#allocation2 + $0x10] sm:$0xff]
        %v821 = vld [vmem:[#allocation2 + $0x18] sm:$0xff]
        %v822 = vld [vmem:[#allocation2 + $0x20] sm:$0xff]
        %v823 = vld [vmem:[#allocation2 + $0x28] sm:$0xff]
        %v824 = vld [vmem:[#allocation2 + $0x30] sm:$0xff]
        %v825 = vld [vmem:[#allocation2 + $0x38] sm:$0xff]
        %826 = vmatprep.subr.bf16.mxu0 0
        %827 = vmatpush1.bf16.msra.mxu0 %v818
        %828 = vmatprep.subr.bf16.mxu0 0
        %829 = vmatpush1.bf16.msra.mxu0 %v819
        %830 = vmatprep.subr.bf16.mxu0 0
        %831 = vmatpush1.bf16.msra.mxu0 %v820
        %832 = vmatprep.subr.bf16.mxu0 0
        %833 = vmatpush1.bf16.msra.mxu0 %v821
        %834 = vmatprep.subr.bf16.mxu0 0
        %835 = vmatpush1.bf16.msra.mxu0 %v822
        %836 = vmatprep.subr.bf16.mxu0 0
        %837 = vmatpush1.bf16.msra.mxu0 %v823
        %838 = vmatprep.subr.bf16.mxu0 0
        %839 = vmatpush1.bf16.msra.mxu0 %v824
        %840 = vmatprep.subr.bf16.mxu0 0
        %841 = vmatpush1.bf16.msra.mxu0 %v825
        %842 = vmatprep.subr.bf16.mxu0 0
        %843 = vmatpush1.bf16.msra.mxu0 0
        %844 = vmatprep.subr.bf16.mxu0 0
        %845 = vmatpush1.bf16.msra.mxu0 0
        %846 = vmatprep.subr.bf16.mxu0 0
        %847 = vmatpush1.bf16.msra.mxu0 0
        %848 = vmatprep.subr.bf16.mxu0 0
        %849 = vmatpush1.bf16.msra.mxu0 0
        %850 = vmatprep.subr.bf16.mxu0 0
        %851 = vmatpush1.bf16.msra.mxu0 0
        %852 = vmatprep.subr.bf16.mxu0 0
        %853 = vmatpush1.bf16.msra.mxu0 0
        %854 = vmatprep.subr.bf16.mxu0 0
        %855 = vmatpush1.bf16.msra.mxu0 0
        %856 = vmatprep.subr.bf16.mxu0 0
        %857 = vmatpush1.bf16.msra.mxu0 0
        %858 = vmatprep.mubr.bf16.mxu0 0
        %859 = vmatmul.mubr.bf16.gmra.mrb[0].mxu0 %v817
        %v860 = vpop.f32.mrb[0].mxu0
        %v861 = vadd.f32 0.0, %v860
        %v862 = vpop.f32.mrb[0].mxu0
        %v863 = vpop.f32.mrb[0].mxu0
        %v864 = vpop.f32.mrb[0].mxu0
        %865 = vdwg.mxu0
        %v866 = vpack.c.bf16 %v861, %v861
        %v867 = vld [vmem:[%s5] sm:$0xf]
        %v868 = vld [vmem:[%s5 + $0x4] sm:$0xf]
        %v869 = vld [vmem:[%s5 + $0x8] sm:$0xf]
        %v870 = vld [vmem:[%s5 + $0xc] sm:$0xf]
        %v871 = vld [vmem:[%s5 + $0x10] sm:$0xf]
        %v872 = vld [vmem:[%s5 + $0x14] sm:$0xf]
        %v873 = vld [vmem:[%s5 + $0x18] sm:$0xf]
        %v874 = vld [vmem:[%s5 + $0x1c] sm:$0xf]
        %v875 = vld [vmem:[%s5 + $0x20] sm:$0xf]
        %v876 = vld [vmem:[%s5 + $0x24] sm:$0xf]
        %v877 = vld [vmem:[%s5 + $0x28] sm:$0xf]
        %v878 = vld [vmem:[%s5 + $0x2c] sm:$0xf]
        %v879 = vld [vmem:[%s5 + $0x30] sm:$0xf]
        %v880 = vld [vmem:[%s5 + $0x34] sm:$0xf]
        %v881 = vld [vmem:[%s5 + $0x38] sm:$0xf]
        %v882 = vld [vmem:[%s5 + $0x3c] sm:$0xf]
        %v883 = vld [vmem:[%s6] sm:$0x1]
        %v885 = vlaneseq
        %v886 = vshrl.u32 %v885, 7
        %v887 = vsub.s32 0, %v886
        %v888 = vrot.slane %v883, %v887
        %v906 = vunpack.c.l.b16 %v867
        %v907 = vunpack.c.l.b16 %v868
        %v908 = vunpack.c.l.b16 %v869
        %v909 = vunpack.c.l.b16 %v870
        %v910 = vunpack.c.l.b16 %v871
        %v911 = vunpack.c.l.b16 %v872
        %v912 = vunpack.c.l.b16 %v873
        %v913 = vunpack.c.l.b16 %v874
        %v914 = vunpack.c.l.b16 %v875
        %v915 = vunpack.c.l.b16 %v876
        %v916 = vunpack.c.l.b16 %v877
        %v917 = vunpack.c.l.b16 %v878
        %v918 = vunpack.c.l.b16 %v879
        %v919 = vunpack.c.l.b16 %v880
        %v920 = vunpack.c.l.b16 %v881
        %v921 = vunpack.c.l.b16 %v882
        %v922 = vpack.c.b16 %v907, %v906
        %v923 = vpack.c.b16 %v909, %v908
        %v924 = vpack.c.b16 %v911, %v910
        %v925 = vpack.c.b16 %v913, %v912
        %v926 = vpack.c.b16 %v915, %v914
        %v927 = vpack.c.b16 %v917, %v916
        %v928 = vpack.c.b16 %v919, %v918
        %v929 = vpack.c.b16 %v921, %v920
        %938 = vmatprep.subr.bf16.mxu0 0
        %939 = vmatpush1.bf16.msra.mxu0 %v922
        %940 = vmatprep.subr.bf16.mxu0 0
        %941 = vmatpush1.bf16.msra.mxu0 %v923
        %942 = vmatprep.subr.bf16.mxu0 0
        %943 = vmatpush1.bf16.msra.mxu0 %v924
        %944 = vmatprep.subr.bf16.mxu0 0
        %945 = vmatpush1.bf16.msra.mxu0 %v925
        %946 = vmatprep.subr.bf16.mxu0 0
        %947 = vmatpush1.bf16.msra.mxu0 %v926
        %948 = vmatprep.subr.bf16.mxu0 0
        %949 = vmatpush1.bf16.msra.mxu0 %v927
        %950 = vmatprep.subr.bf16.mxu0 0
        %951 = vmatpush1.bf16.msra.mxu0 %v928
        %952 = vmatprep.subr.bf16.mxu0 0
        %953 = vmatpush1.bf16.msra.mxu0 %v929
        %954 = vmatprep.subr.bf16.mxu0 0
        %955 = vmatpush1.bf16.msra.mxu0 0
        %956 = vmatprep.subr.bf16.mxu0 0
        %957 = vmatpush1.bf16.msra.mxu0 0
        %958 = vmatprep.subr.bf16.mxu0 0
        %959 = vmatpush1.bf16.msra.mxu0 0
        %960 = vmatprep.subr.bf16.mxu0 0
        %961 = vmatpush1.bf16.msra.mxu0 0
        %962 = vmatprep.subr.bf16.mxu0 0
        %963 = vmatpush1.bf16.msra.mxu0 0
        %964 = vmatprep.subr.bf16.mxu0 0
        %965 = vmatpush1.bf16.msra.mxu0 0
        %966 = vmatprep.subr.bf16.mxu0 0
        %967 = vmatpush1.bf16.msra.mxu0 0
        %968 = vmatprep.subr.bf16.mxu0 0
        %969 = vmatpush1.bf16.msra.mxu0 0
        %970 = vmatprep.mubr.bf16.mxu0 0
        %971 = vmatmul.mubr.bf16.gmra.mrb[0].mxu0 %v866
        %v972 = vpop.f32.mrb[0].mxu0
        %v973 = vadd.f32 %v888, %v972
        %v974 = vpop.f32.mrb[0].mxu0
        %v975 = vpop.f32.mrb[0].mxu0
        %v976 = vpop.f32.mrb[0].mxu0
        %977 = vdwg.mxu0
        %978 = vst [vmem:[%s7] sm:$0xff] %v973
      $region60: #{gcn_forward_fused.1} parent=47 // pred_fallthru
        _
      // Predicated region
      $region61: #{gcn_forward_fused.1} parent=47 // pred_check
        %p979 = pneg %p205
      $region62: #{gcn_forward_fused.1} parent=47 // pred_check_branch
        %981 = sbr.rel (%p979) target = $region64
      $region63: #{gcn_forward_fused.1} parent=47 // pred_region
        _
      $region64: #{gcn_forward_fused.1} parent=47 // pred_fallthru
        _
      // Predicated region
      $region65: #{gcn_forward_fused.1} parent=47 // pred_check
        %p982 = pneg %p205
      $region66: #{gcn_forward_fused.1} parent=47 // pred_check_branch
        %984 = sbr.rel (%p982) target = $region68
      $region67: #{gcn_forward_fused.1} parent=47 // pred_region
        _
      $region68: #{gcn_forward_fused.1} parent=47 // pred_fallthru
        _
    $region48: #{gcn_forward_fused.1} parent=5 // pred_fallthru
      _
    %p985 = scmp.le.s32.totalorder 2, %s13
    // Predicated region
    $region69: #{gcn_forward_fused.1} parent=5 // pred_check
      %p986 = pneg %p985
    $region70: #{gcn_forward_fused.1} parent=5 // pred_check_branch
      %988 = sbr.rel (%p986) target = $region72
    $region71: #{gcn_forward_fused.1} parent=5 // pred_region
      %s989 = ssub.s32 %s13, 2
    $region72: #{gcn_forward_fused.1} parent=5 // pred_fallthru
      _
  $region6: #{gcn_forward_fused.1} parent=0 // loop_footer
    %s17 = sadd.s32 1, %s13
  $region7: #{gcn_forward_fused.1} parent=0 // loop_footer_branch
    %12 = sbr.rel target = $region3
  $region8: #{gcn_forward_fused.1} parent=0 // loop_exit
    _

</llo_original>
